<compile_context>
chip_gen: v5e
topology: v5e:2x2
jax: 0.10.0
libtpu: 0.0.40
codegen_flags: <defaults>
</compile_context>

<pallas_src>
import functools

import jax
import jax.numpy as jnp
from jax.experimental import pallas as pl
from jax.experimental.pallas import tpu as pltpu

GAMMA = 2
ALPHA = 0.25
LOSS_WEIGHT = 1.0

LANES = 128
MAX_BLOCK_ROWS = 2048   # 2048x128xf32 = 1 MiB/buffer; 2 in x 2 bufs + acc ~ 5 MiB


def _int_pow(v, g):
    if g <= 0:
        return jnp.ones_like(v)
    r = v
    for _ in range(g - 1):
        r = r * v
    return r


def _focal_kernel(x_ref, t_ref, o_ref, acc_ref, *, gamma, alpha, scale,
                  steps_per_part, block_rows, valid_rows, need_row_mask):
    c = pl.program_id(0)
    i = pl.program_id(1)

    @pl.when(i == 0)
    def _():
        acc_ref[...] = jnp.zeros_like(acc_ref)

    x = x_ref[...].astype(jnp.float32)
    t = t_ref[...].astype(jnp.float32)

    # Numerically stable pieces, sharing z = exp(-|x|):
    #   log(pt)   = log_sigmoid(x)  = min(x, 0) - log1p(z)
    #   log(1-pt) = log_sigmoid(-x) = log(pt) - x
    #   pt        = sigmoid(x)      = where(x >= 0, 1, z) / (1 + z)
    z = jnp.exp(-jnp.abs(x))
    log_pt = jnp.minimum(x, 0.0) - jnp.log1p(z)
    log_1m_pt = log_pt - x
    inv = 1.0 / (1.0 + z)
    pt = jnp.where(x >= 0.0, inv, z * inv)
    one_m_pt = 1.0 - pt

    if isinstance(gamma, int):
        omp_pow = _int_pow(one_m_pt, gamma)
        pt_pow = _int_pow(pt, gamma)
    else:  # non-integral gamma: pow path (2 extra EUP ops/elem)
        omp_pow = one_m_pt ** gamma
        pt_pow = pt ** gamma

    loss = (-alpha * omp_pow * t * log_pt
            - (1.0 - alpha) * pt_pow * (1.0 - t) * log_1m_pt)

    if need_row_mask:
        # Only blocks that straddle / exceed the last valid row pay the mask.
        start_row = (c * steps_per_part + i) * block_rows
        fully_valid = start_row + block_rows <= valid_rows

        @pl.when(fully_valid)
        def _():
            acc_ref[...] += loss

        @pl.when(jnp.logical_not(fully_valid))
        def _():
            rid = start_row + jax.lax.broadcasted_iota(
                jnp.int32, (block_rows, LANES), 0)
            acc_ref[...] += jnp.where(rid < valid_rows, loss, 0.0)
    else:
        acc_ref[...] += loss

    @pl.when(i == steps_per_part - 1)
    def _():
        o_ref[0, 0] = jnp.sum(acc_ref[...]) * jnp.float32(scale)


def _is_v7x():
    try:
        kind = jax.devices()[0].device_kind.lower()
    except Exception:
        return False
    return ("v7" in kind) or ("7x" in kind)


def bce_focal_loss(_input, target, gamma=GAMMA, alpha=ALPHA, reduction="sum",
                   loss_weight=LOSS_WEIGHT):
    assert _input.shape == target.shape
    assert reduction in ("sum", "elementwise_mean"), \
        "only 'sum' (default) and 'elementwise_mean' reductions are implemented"
    # TODO(synk): reduction='none' (elementwise passthrough) is not implemented.

    # Integral float gamma (e.g. 2.0) -> int so the kernel multiplies, not pows.
    if isinstance(gamma, float) and gamma.is_integer():
        gamma = int(gamma)

    n = int(_input.size)
    if n == 0:
        return jnp.zeros((), jnp.float32)

    rows = pl.cdiv(n, LANES)
    lane_pad = rows * LANES - n

    x_flat = _input.reshape(-1)
    t_flat = target.reshape(-1)
    if lane_pad:
        # Sentinel tail pad (<128 elems): x=-1e4 with t=0 -> exactly zero loss,
        # so no lane-tail mask is needed in the kernel.
        x_flat = jnp.pad(x_flat, (0, lane_pad), constant_values=-1e4)
        t_flat = jnp.pad(t_flat, (0, lane_pad), constant_values=0)
    x2 = x_flat.reshape(rows, LANES)
    t2 = t_flat.reshape(rows, LANES)

    scale = loss_weight / 54.0
    if reduction == "elementwise_mean":
        scale = scale / n

    block_rows = rows if rows <= MAX_BLOCK_ROWS else MAX_BLOCK_ROWS
    total_steps = pl.cdiv(rows, block_rows)
    last_block = total_steps - 1

    def launch(num_parts, lead_sem):
        steps_per_part = pl.cdiv(total_steps, num_parts)
        need_row_mask = num_parts * steps_per_part * block_rows > rows

        kern = functools.partial(
            _focal_kernel, gamma=gamma, alpha=alpha, scale=scale,
            steps_per_part=steps_per_part, block_rows=block_rows,
            valid_rows=rows, need_row_mask=need_row_mask)

        def in_map(c, i):
            # Clamp so an over-coverage (fully masked) block still DMAs in-bounds.
            return (jnp.minimum(c * steps_per_part + i, last_block), 0)

        in_spec = pl.BlockSpec((block_rows, LANES), in_map)
        return pl.pallas_call(
            kern,
            out_shape=jax.ShapeDtypeStruct((num_parts, 1), jnp.float32),
            grid_spec=pltpu.PrefetchScalarGridSpec(
                num_scalar_prefetch=0,
                grid=(num_parts, steps_per_part),
                in_specs=[in_spec, in_spec],
                out_specs=pl.BlockSpec((1, 1), lambda c, i: (c, 0),
                                       memory_space=pltpu.MemorySpace.SMEM),
                scratch_shapes=[pltpu.VMEM((block_rows, LANES), jnp.float32)],
            ),
            compiler_params=pltpu.CompilerParams(
                dimension_semantics=(lead_sem, pltpu.ARBITRARY)),
        )(x2, t2)

    if _is_v7x() and total_steps >= 2:
        # Split the row blocks across v7x's two TensorCores.
        try:
            partials = launch(2, pltpu.CORE_PARALLEL)
        except Exception:  # conservative fallback if core-split lowering fails
            partials = launch(1, pltpu.ARBITRARY)
    else:
        partials = launch(1, pltpu.ARBITRARY)
    return jnp.sum(partials)


def _reference(_input, target, gamma=GAMMA, alpha=ALPHA, loss_weight=LOSS_WEIGHT,
               reduction="sum"):
    x = _input.astype(jnp.float32)
    t = target.astype(jnp.float32)
    log_pt = jax.nn.log_sigmoid(x)
    log_1m_pt = log_pt - x
    pt = jnp.exp(log_pt)
    loss = (-alpha * (1.0 - pt) ** gamma * t * log_pt
            - (1.0 - alpha) * pt ** gamma * (1.0 - t) * log_1m_pt)
    red = jnp.mean(loss) if reduction == "elementwise_mean" else jnp.sum(loss)
    return red * loss_weight / 54.0


if __name__ == "__main__":
    key = jax.random.PRNGKey(0)
    k1, k2, k3, k4 = jax.random.split(key, 4)

    # Main case: logits and binary targets, NCHW (n is a multiple of 128 -> no pad).
    x = jax.random.normal(k1, (2, 4, 16, 16), dtype=jnp.float32)
    tgt = (jax.random.uniform(k2, (2, 4, 16, 16)) > 0.5).astype(jnp.float32)
    out = jax.block_until_ready(bce_focal_loss(x, tgt))
    ref = _reference(x, tgt)
    assert jnp.allclose(out, ref, rtol=1e-5, atol=1e-6), (out, ref)

    # Unaligned case (n % 128 != 0): exercises the sentinel tail pad.
    x_u = jax.random.normal(k3, (3, 5, 7, 2), dtype=jnp.float32)
    t_u = (jax.random.uniform(k4, (3, 5, 7, 2)) > 0.5).astype(jnp.float32)
    out_u = jax.block_until_ready(bce_focal_loss(x_u, t_u))
    ref_u = _reference(x_u, t_u)
    assert jnp.allclose(out_u, ref_u, rtol=1e-5, atol=1e-6), (out_u, ref_u)

    print("KERNEL_OK")
</pallas_src>

<mosaic_0001>
module attributes {stable_mosaic.version = 11 : i64} {
  func.func @_focal_kernel(%arg0: i32, %arg1: i32, %arg2: memref<16x128xf32, #tpu.memory_space<vmem>>, %arg3: memref<16x128xf32, #tpu.memory_space<vmem>>, %arg4: memref<1x1xf32, #tpu.memory_space<smem>>, %arg5: memref<16x128xf32, #tpu.memory_space<vmem>>) attributes {dimension_semantics = [#tpu.dimension_semantics<arbitrary>, #tpu.dimension_semantics<arbitrary>], iteration_bounds = array<i64: 1, 1>, scalar_prefetch = 0 : i64, scratch_operands = 1 : i64, tpu.core_type = #tpu.core_type<tc>, window_params = [{transform_indices = @transform_0, window_bounds = array<i64: 16, 128>}, {transform_indices = @transform_1, window_bounds = array<i64: 16, 128>}, {transform_indices = @transform_2, window_bounds = array<i64: 1, 1>}]} {
    %c0_i32 = arith.constant 0 : i32
    %0 = arith.cmpi eq, %arg1, %c0_i32 : i32
    %1 = arith.extui %0 : i1 to i32
    %c0_i32_0 = arith.constant 0 : i32
    %2 = arith.cmpi ne, %1, %c0_i32_0 : i32
    scf.if %2 {
      %cst_18 = arith.constant 0.000000e+00 : f32
      %43 = vector.broadcast %cst_18 : f32 to vector<16x128xf32>
      %c0_19 = arith.constant 0 : index
      %c0_20 = arith.constant 0 : index
      %44 = vector.load %arg5[%c0_19, %c0_20] : memref<16x128xf32, #tpu.memory_space<vmem>>, vector<16x128xf32>
      tpu.vector_store %arg5[%c0_19, %c0_20], %43 {strides = array<i32>} : memref<16x128xf32, #tpu.memory_space<vmem>>, vector<16x128xf32>,
    } else {
    }
    %c0 = arith.constant 0 : index
    %c0_1 = arith.constant 0 : index
    %3 = vector.load %arg2[%c0, %c0_1] : memref<16x128xf32, #tpu.memory_space<vmem>>, vector<16x128xf32>
    %c0_2 = arith.constant 0 : index
    %c0_3 = arith.constant 0 : index
    %4 = vector.load %arg3[%c0_2, %c0_3] : memref<16x128xf32, #tpu.memory_space<vmem>>, vector<16x128xf32>
    %5 = math.absf %3 : vector<16x128xf32>
    %cst = arith.constant 0.000000e+00 : f32
    %6 = vector.broadcast %cst : f32 to vector<16x128xf32>
    %7 = arith.subf %6, %5 : vector<16x128xf32>
    %8 = math.exp %7 : vector<16x128xf32>
    %cst_4 = arith.constant 0.000000e+00 : f32
    %9 = vector.broadcast %cst_4 : f32 to vector<16x128xf32>
    %10 = arith.minimumf %3, %9 : vector<16x128xf32>
    %11 = math.log1p %8 : vector<16x128xf32>
    %12 = arith.subf %10, %11 : vector<16x128xf32>
    %13 = arith.subf %12, %3 : vector<16x128xf32>
    %cst_5 = arith.constant 1.000000e+00 : f32
    %14 = vector.broadcast %cst_5 : f32 to vector<16x128xf32>
    %15 = arith.addf %14, %8 : vector<16x128xf32>
    %cst_6 = arith.constant 1.000000e+00 : f32
    %16 = vector.broadcast %cst_6 : f32 to vector<16x128xf32>
    %17 = arith.divf %16, %15 : vector<16x128xf32>
    %cst_7 = arith.constant 0.000000e+00 : f32
    %18 = vector.broadcast %cst_7 : f32 to vector<16x128xf32>
    %19 = arith.cmpf oge, %3, %18 : vector<16x128xf32>
    %20 = arith.mulf %8, %17 : vector<16x128xf32>
    %21 = arith.select %19, %17, %20 : vector<16x128xi1>, vector<16x128xf32>
    %cst_8 = arith.constant 1.000000e+00 : f32
    %22 = vector.broadcast %cst_8 : f32 to vector<16x128xf32>
    %23 = arith.subf %22, %21 : vector<16x128xf32>
    %24 = arith.mulf %23, %23 : vector<16x128xf32>
    %25 = arith.mulf %21, %21 : vector<16x128xf32>
    %cst_9 = arith.constant -2.500000e-01 : f32
    %26 = vector.broadcast %cst_9 : f32 to vector<16x128xf32>
    %27 = arith.mulf %26, %24 : vector<16x128xf32>
    %28 = arith.mulf %27, %4 : vector<16x128xf32>
    %29 = arith.mulf %28, %12 : vector<16x128xf32>
    %cst_10 = arith.constant 7.500000e-01 : f32
    %30 = vector.broadcast %cst_10 : f32 to vector<16x128xf32>
    %31 = arith.mulf %30, %25 : vector<16x128xf32>
    %cst_11 = arith.constant 1.000000e+00 : f32
    %32 = vector.broadcast %cst_11 : f32 to vector<16x128xf32>
    %33 = arith.subf %32, %4 : vector<16x128xf32>
    %34 = arith.mulf %31, %33 : vector<16x128xf32>
    %35 = arith.mulf %34, %13 : vector<16x128xf32>
    %36 = arith.subf %29, %35 : vector<16x128xf32>
    %c0_12 = arith.constant 0 : index
    %c0_13 = arith.constant 0 : index
    %37 = vector.load %arg5[%c0_12, %c0_13] : memref<16x128xf32, #tpu.memory_space<vmem>>, vector<16x128xf32>
    %38 = arith.addf %37, %36 : vector<16x128xf32>
    %c0_14 = arith.constant 0 : index
    %c0_15 = arith.constant 0 : index
    %39 = vector.load %arg5[%c0_14, %c0_15] : memref<16x128xf32, #tpu.memory_space<vmem>>, vector<16x128xf32>
    tpu.vector_store %arg5[%c0_14, %c0_15], %38 {strides = array<i32>} : memref<16x128xf32, #tpu.memory_space<vmem>>, vector<16x128xf32>,
    %c0_i32_16 = arith.constant 0 : i32
    %40 = arith.cmpi eq, %arg1, %c0_i32_16 : i32
    %41 = arith.extui %40 : i1 to i32
    %c0_i32_17 = arith.constant 0 : i32
    %42 = arith.cmpi ne, %41, %c0_i32_17 : i32
    scf.if %42 {
      %c0_18 = arith.constant 0 : index
      %c0_19 = arith.constant 0 : index
      %43 = vector.load %arg5[%c0_18, %c0_19] : memref<16x128xf32, #tpu.memory_space<vmem>>, vector<16x128xf32>
      %44 = vector.shape_cast %43 : vector<16x128xf32> to vector<1x16x128xf32>
      %cst_20 = arith.constant dense<0.000000e+00> : vector<1xf32>
      %45 = vector.multi_reduction <add>, %44, %cst_20 [1, 2] : vector<1x16x128xf32> to vector<1xf32>
      %46 = vector.shape_cast %45 : vector<1xf32> to vector<1x1x1xf32>
      %47 = vector.extract %46[0, 0, 0] : f32 from vector<1x1x1xf32>
      %cst_21 = arith.constant 0.0185185187 : f32
      %48 = arith.mulf %47, %cst_21 : f32
      %c0_22 = arith.constant 0 : index
      %c0_23 = arith.constant 0 : index
      %49 = memref.load %arg4[%c0_22, %c0_23] : memref<1x1xf32, #tpu.memory_space<smem>>
      memref.store %48, %arg4[%c0_22, %c0_23] : memref<1x1xf32, #tpu.memory_space<smem>>
    } else {
    }
    return
  }
  func.func @transform_0(%arg0: i32, %arg1: i32) -> (i32, i32) {
    %c1_i32 = arith.constant 1 : i32
    %0 = arith.muli %arg0, %c1_i32 : i32
    %1 = arith.addi %0, %arg1 : i32
    %c0_i32 = arith.constant 0 : i32
    %2 = arith.minsi %1, %c0_i32 : i32
    %c0_i32_0 = arith.constant 0 : i32
    %c0_i32_1 = arith.constant 0 : i32
    return %2, %c0_i32_0 : i32, i32
  }
  func.func @transform_1(%arg0: i32, %arg1: i32) -> (i32, i32) {
    %c1_i32 = arith.constant 1 : i32
    %0 = arith.muli %arg0, %c1_i32 : i32
    %1 = arith.addi %0, %arg1 : i32
    %c0_i32 = arith.constant 0 : i32
    %2 = arith.minsi %1, %c0_i32 : i32
    %c0_i32_0 = arith.constant 0 : i32
    %c0_i32_1 = arith.constant 0 : i32
    return %2, %c0_i32_0 : i32, i32
  }
  func.func @transform_2(%arg0: i32, %arg1: i32) -> (i32, i32) {
    %c0_i32 = arith.constant 0 : i32
    %c0_i32_0 = arith.constant 0 : i32
    return %arg0, %c0_i32 : i32, i32
  }
}

</mosaic_0001>

<llo_original>
// kernel: tpu_custom_call.1
$region0: #{tpu_custom_call.1}
  #allocation0 [shape = 'u32[]', space=smem, size = 0x4, offset = 0x4, fixed_abs, tag = 'smem constant byte address 0x4 - core index']
  #allocation1 [shape = 'u32[72,128]{1,0:T(1,128)}', space=vmem, size = 0x9000, scoped, tag = 'internal scratch']
  #allocation2 [shape = 'f32[16,128]{1,0:T(8,128)}', space=vmem, size = 0x2000, scoped, tag = 'scratch operand']
  %s0 = inlined_call_operand.hbm [shape: f32[16,128], index: 0, kind: input, shape index: {}]
  %s1 = inlined_call_operand.hbm [shape: f32[16,128], index: 1, kind: input, shape index: {}]
  %s2 = inlined_call_operand.hbm [shape: f32[1,1], index: 2, kind: output, shape index: {}]
  %s3 = sld [smem:[#allocation0]]
  $region34: #{tpu_custom_call.1} parent=0
    _
  %s5 = ssub.s32 1, %s3
  %s6 = scalar_select 0, %s5, %s3
  $region1: #{tpu_custom_call.1} parent=0
    #allocation3 [shape = 'u8[8192]{0}', space=vmem, size = 0x2000, scoped, tag = 'input window, operand 0, single buffered']
    #allocation4 [shape = 's32[1]{0}', space=sflag, size = 0x4, scoped, tag = 'scoped memory for tpu_custom_call.1']
    #allocation5 [shape = 's32[1]{0}', space=sflag, size = 0x4, scoped, tag = 'scoped memory for tpu_custom_call.1']
    #allocation6 [shape = 'u8[8192]{0}', space=vmem, size = 0x2000, scoped, tag = 'input window, operand 1, single buffered']
    #allocation7 [shape = 's32[1]{0}', space=sflag, size = 0x4, scoped, tag = 'scoped memory for tpu_custom_call.1']
    #allocation8 [shape = 'u8[512]{0}', space=smem, size = 0x200, scoped, tag = 'output window, operand 0, single buffered']
    %7 = vsyncpa [#allocation4], 0
    %8 = vsyncpa [#allocation7], 0
    %9 = vsyncpa [#allocation5], 0
    // Predicated region
    $region2: #{tpu_custom_call.1} parent=1 // pred_check
      _
    $region3: #{tpu_custom_call.1} parent=1 // pred_check_branch
      %11 = sbr.rel (0) target = $region5
    $region4: #{tpu_custom_call.1} parent=1 // pred_region
      %s12 = sadd.s32 0, 0
      %p13 = scmp.lt.s32.totalorder %s12, 0
      %s14 = scalar_select %p13, %s12, 0
      %s15 = smul.u32 2, %s14
      %17 = vsyncadd [#allocation4], 0
      %s18 = smul.addr %s15, 8
      %s19 = scalar_lea.hbm %s0, %s18
      %s20 = sshll.u32 %s19, 4
      %s21 = int_to_ptr.hbm [resolvable:$true] %s20
      %s22 = sshll.u32 [#allocation3], 4
      %s23 = int_to_ptr.vmem [resolvable:$true] %s22
      %28 = dma.hbm_to_vmem [thread:$0]  %s21, 256, %s23, [#allocation4], 128, 128, 8
    $region5: #{tpu_custom_call.1} parent=1 // pred_fallthru
      _
    // Predicated region
    $region6: #{tpu_custom_call.1} parent=1 // pred_check
      _
    $region7: #{tpu_custom_call.1} parent=1 // pred_check_branch
      %30 = sbr.rel (0) target = $region9
    $region8: #{tpu_custom_call.1} parent=1 // pred_region
      %s31 = sadd.s32 0, 0
      %p32 = scmp.lt.s32.totalorder %s31, 0
      %s33 = scalar_select %p32, %s31, 0
      %s34 = smul.u32 2, %s33
      %36 = vsyncadd [#allocation7], 0
      %s37 = smul.addr %s34, 8
      %s38 = scalar_lea.hbm %s1, %s37
      %s39 = sshll.u32 %s38, 4
      %s40 = int_to_ptr.hbm [resolvable:$true] %s39
      %s41 = sshll.u32 [#allocation6], 4
      %s42 = int_to_ptr.vmem [resolvable:$true] %s41
      %47 = dma.hbm_to_vmem [thread:$0]  %s40, 256, %s42, [#allocation7], 128, 128, 8
    $region9: #{tpu_custom_call.1} parent=1 // pred_fallthru
      _
    // Predicated region
    $region10: #{tpu_custom_call.1} parent=1 // pred_check
      _
    $region11: #{tpu_custom_call.1} parent=1 // pred_check_branch
      %49 = sbr.rel (0) target = $region13
    $region12: #{tpu_custom_call.1} parent=1 // pred_region
      %51 = dma.done [#allocation4], 256
    $region13: #{tpu_custom_call.1} parent=1 // pred_fallthru
      _
    // Predicated region
    $region14: #{tpu_custom_call.1} parent=1 // pred_check
      _
    $region15: #{tpu_custom_call.1} parent=1 // pred_check_branch
      %53 = sbr.rel (0) target = $region17
    $region16: #{tpu_custom_call.1} parent=1 // pred_region
      %55 = dma.done [#allocation7], 256
    $region17: #{tpu_custom_call.1} parent=1 // pred_fallthru
      _
    %s56 = sadd.s32 0, 0
    %p57 = scmp.lt.s32.totalorder %s56, 0
    %s58 = scalar_select %p57, %s56, 0
    %s59 = smul.u32 2, %s58
    %s60 = sadd.s32 0, 0
    %p61 = scmp.lt.s32.totalorder %s60, 0
    %s62 = scalar_select %p61, %s60, 0
    %s63 = smul.u32 2, %s62
    %p64 = scmp.eq.s32.totalorder 0, 0
    // Predicated region
    $region18: #{tpu_custom_call.1} parent=1 // pred_check
      %p65 = pneg %p64
    $region19: #{tpu_custom_call.1} parent=1 // pred_check_branch
      %67 = sbr.rel (%p65) target = $region21
    $region20: #{tpu_custom_call.1} parent=1 // pred_region
      %68 = vst [vmem:[#allocation2] sm:$0xff] 0.0
      %69 = vst [vmem:[#allocation2 + $0x8] sm:$0xff] 0.0
    $region21: #{tpu_custom_call.1} parent=1 // pred_fallthru
      _
    %v70 = vld [vmem:[#allocation3] sm:$0xff]
    %v71 = vld [vmem:[#allocation3 + $0x8] sm:$0xff]
    %v72 = vld [vmem:[#allocation6] sm:$0xff]
    %v73 = vld [vmem:[#allocation6 + $0x8] sm:$0xff]
    %v74 = vand.u32 2147483647, %v70
    %v75 = vand.u32 2147483647, %v71
    %v76 = vsub.f32 0.0, %v74
    %v77 = vsub.f32 0.0, %v75
    %v78 = vmul.f32 %v76, 1.442695
    %v79 = vpow.pop %v78
    %v80 = vmul.f32 %v77, 1.442695
    %v81 = vpow.pop %v80
    %v82 = vmin.f32 %v70, 0.0
    %v83 = vmin.f32 %v71, 0.0
    %v84 = vadd.f32 %v79, 1.0
    %v85 = vlog2.pop %v84
    %v86 = vmul.f32 %v85, 0.6931472
    %v87 = vmul.f32 -0.5, %v79
    %v88 = vadd.f32 %v87, 1.0
    %v89 = vmul.f32 %v88, %v79
    %v90 = vand.u32 2147483647, %v79
    %vm91 = vcmp.lt.f32.partialorder %v90, 0.0004427343
    %v92 = vsel %vm91, %v89, %v86
    %v93 = vadd.f32 %v81, 1.0
    %v94 = vlog2.pop %v93
    %v95 = vmul.f32 %v94, 0.6931472
    %v96 = vmul.f32 -0.5, %v81
    %v97 = vadd.f32 %v96, 1.0
    %v98 = vmul.f32 %v97, %v81
    %v99 = vand.u32 2147483647, %v81
    %vm100 = vcmp.lt.f32.partialorder %v99, 0.0004427343
    %v101 = vsel %vm100, %v98, %v95
    %v102 = vsub.f32 %v82, %v92
    %v103 = vsub.f32 %v83, %v101
    %v104 = vsub.f32 %v102, %v70
    %v105 = vsub.f32 %v103, %v71
    %v106 = vadd.f32 %v79, 1.0
    %v107 = vadd.f32 %v81, 1.0
    %v108 = vrcp.pop %v106
    %v109 = vmul.f32 %v106, %v108
    %v110 = vsub.f32 1.0, %v109
    %v111 = vmul.f32 %v108, %v110
    %v112 = vadd.f32 %v108, %v111
    %vm113 = vweird.f32 %v106
    %vm114 = vweird.f32 %v108
    %vm115 = vmor %vm113, %vm114
    %v116 = vsel %vm115, %v108, %v112
    %v117 = vand.u32 2147483647, %v106
    %vm118 = vcmp.eq.f32.partialorder %v117, 8.507059e+37
    %v119 = vand.u32 %v106, 2147483648
    %v120 = vor.u32 1.1754944e-38, %v119
    %v121 = vsel %vm118, %v120, %v116
    %v122 = vmul.f32 1.0, %v121
    %v123 = vrcp.pop %v107
    %v124 = vmul.f32 %v107, %v123
    %v125 = vsub.f32 1.0, %v124
    %v126 = vmul.f32 %v123, %v125
    %v127 = vadd.f32 %v123, %v126
    %vm128 = vweird.f32 %v107
    %vm129 = vweird.f32 %v123
    %vm130 = vmor %vm128, %vm129
    %v131 = vsel %vm130, %v123, %v127
    %v132 = vand.u32 2147483647, %v107
    %vm133 = vcmp.eq.f32.partialorder %v132, 8.507059e+37
    %v134 = vand.u32 %v107, 2147483648
    %v135 = vor.u32 1.1754944e-38, %v134
    %v136 = vsel %vm133, %v135, %v131
    %v137 = vmul.f32 1.0, %v136
    %vm138 = vcmp.ge.f32.partialorder %v70, 0.0
    %vm139 = vcmp.ge.f32.partialorder %v71, 0.0
    %v140 = vmul.f32 %v79, %v122
    %v141 = vmul.f32 %v81, %v137
    %v142 = vsel %vm138, %v122, %v140
    %v143 = vsel %vm139, %v137, %v141
    %v144 = vsub.f32 1.0, %v142
    %v145 = vsub.f32 1.0, %v143
    %v146 = vmul.f32 %v144, %v144
    %v147 = vmul.f32 %v145, %v145
    %v148 = vmul.f32 %v142, %v142
    %v149 = vmul.f32 %v143, %v143
    %v150 = vmul.f32 %v146, -0.25
    %v151 = vmul.f32 %v147, -0.25
    %v152 = vmul.f32 %v150, %v72
    %v153 = vmul.f32 %v151, %v73
    %v154 = vmul.f32 %v152, %v102
    %v155 = vmul.f32 %v153, %v103
    %v156 = vmul.f32 %v148, 0.75
    %v157 = vmul.f32 %v149, 0.75
    %v158 = vsub.f32 1.0, %v72
    %v159 = vsub.f32 1.0, %v73
    %v160 = vmul.f32 %v156, %v158
    %v161 = vmul.f32 %v157, %v159
    %v162 = vmul.f32 %v160, %v104
    %v163 = vmul.f32 %v161, %v105
    %v164 = vsub.f32 %v154, %v162
    %v165 = vsub.f32 %v155, %v163
    %v166 = vld [vmem:[#allocation2] sm:$0xff]
    %v167 = vld [vmem:[#allocation2 + $0x8] sm:$0xff]
    %v168 = vadd.f32 %v166, %v164
    %v169 = vadd.f32 %v167, %v165
    %170 = vst [vmem:[#allocation2] sm:$0xff] %v168
    %171 = vst [vmem:[#allocation2 + $0x8] sm:$0xff] %v169
    // Predicated region
    $region22: #{tpu_custom_call.1} parent=1 // pred_check
      %p172 = pneg %p64
    $region23: #{tpu_custom_call.1} parent=1 // pred_check_branch
      %174 = sbr.rel (%p172) target = $region25
    $region24: #{tpu_custom_call.1} parent=1 // pred_region
      %v175 = vld [vmem:[#allocation2] sm:$0xff]
      %v176 = vld [vmem:[#allocation2 + $0x8] sm:$0xff]
      %v177 = vadd.f32 %v175, %v176
      %178 = vadd.xlane.f32.xlu0 %v177
      %v179 = vpop.xlane.xlu0 %178
      %v180 = vrot.slane %v179, 4
      %v181 = vadd.f32 %v179, %v180
      %v182 = vrot.slane %v181, 2
      %v183 = vadd.f32 %v181, %v182
      %v184 = vrot.slane %v183, 1
      %v185 = vadd.f32 %v183, %v184
      %s186 = vtos %v185
      %s187 = smul.f32 %s186, 0.018518519
      %s188 = scalar_lea.smem [#allocation8], 0
      %189 = sst [smem:[%s188]] %s187
    $region25: #{tpu_custom_call.1} parent=1 // pred_fallthru
      _
    // Predicated region
    $region26: #{tpu_custom_call.1} parent=1 // pred_check
      _
    $region27: #{tpu_custom_call.1} parent=1 // pred_check_branch
      %191 = sbr.rel (0) target = $region29
    $region28: #{tpu_custom_call.1} parent=1 // pred_region
      %193 = vsyncadd [#allocation5], 0
      %s195 = sshll.u32 %s2, 4
      %s196 = int_to_ptr.hbm [resolvable:$true] %s195
      %198 = dma.smem_to_hbm [#allocation8], 16, %s196, [#allocation5]
    $region29: #{tpu_custom_call.1} parent=1 // pred_fallthru
      _
    // Predicated region
    $region30: #{tpu_custom_call.1} parent=1 // pred_check
      _
    $region31: #{tpu_custom_call.1} parent=1 // pred_check_branch
      %200 = sbr.rel (0) target = $region33
    $region32: #{tpu_custom_call.1} parent=1 // pred_region
      %202 = dma.done [#allocation5], 16
    $region33: #{tpu_custom_call.1} parent=1 // pred_fallthru
      _
    %203 = sfence
    %204 = vsyncpa [#allocation4], 1
    %205 = vsyncpa [#allocation7], 1
    %206 = vsyncpa [#allocation5], 1

</llo_original>
